<compile_context>
chip_gen: v6e
topology: v6e:2x2x1
jax: 0.10.0
libtpu: 0.0.40
codegen_flags: <defaults>
</compile_context>

<pallas_src>
import functools

import jax
import jax.numpy as jnp
from jax.experimental import pallas as pl
from jax.experimental.pallas import tpu as pltpu

LANE = 128     # TPU lane width  (last dim)
SUBLANE = 8    # TPU sublane width (second-to-last dim)

IN_DIM = 768
HID_DIM = 256
OUT_DIM = 1
NEG_SLOPE = 0.2   # nn.LeakyReLU(0.2) -- explicit in the module, not the 0.01 default


def _round_up(x, m):
    return -(-x // m) * m


# ------------------------------ fused kernel --------------------------------
def _mlp_head_kernel(x_ref, w1_ref, b1_ref, w2_ref, b2_ref, o_ref, *, neg_slope):
    # x_ref : (tm, 768) bf16     w1_ref: (768, 256) bf16
    # b1_ref: (1, 256)  f32      w2_ref: (1, 256)   f32  (W2 as a row vector)
    # b2_ref: (1, 1)    f32      o_ref : (tm, 1)    f32
    #
    # Layer 1 on the MXU, f32 accumulation; epilogue in f32.
    h = jnp.dot(x_ref[...], w1_ref[...], preferred_element_type=jnp.float32)
    h = h + b1_ref[...]
    h = jnp.where(h >= 0, h, neg_slope * h)                     # LeakyReLU(0.2)
    # Layer 2 has a single output neuron: VPU multiply + lane reduction
    # (no zero-padded GEMM, no 128-lane padded output slab).
    y = jnp.sum(h * w2_ref[...], axis=-1, keepdims=True) + b2_ref[...]
    o_ref[...] = jnp.maximum(y, 0.0).astype(o_ref.dtype)        # ReLU


# -------------------------------- wrapper ------------------------------------
def mlp_head(feat, params, *, neg_slope=NEG_SLOPE, tm_max=2048,
             min_rows_for_kernel=256):
    """feat: (N, 768) -> (N, 1), equivalent to MLP_Head.forward."""
    w1, b1, w2, b2 = params["w1"], params["b1"], params["w2"], params["b2"]
    N, K = feat.shape
    Kw, H = w1.shape
    assert K == Kw, (K, Kw)
    O = w2.shape[1]
    assert O == OUT_DIM == 1
    out_dtype = feat.dtype

    # Small-batch bypass: for tiny N the kernel is a single grid step dominated
    # by pallas_call fixed overhead; let XLA fuse the 3-op head instead.
    if N < min_rows_for_kernel:
        h = feat @ w1 + b1
        h = jnp.where(h >= 0, h, neg_slope * h)
        return jnp.maximum(h @ w2 + b2, 0.0)

    # bf16 streaming operands (halves HBM bytes, full MXU rate); everything
    # touched by the epilogue stays f32.
    x = feat.astype(jnp.bfloat16)
    w1c = w1.astype(jnp.bfloat16)
    b1r = b1.reshape(1, H).astype(jnp.float32)
    w2r = w2.reshape(1, H).astype(jnp.float32)       # (256, 1) -> row vector
    b2r = b2.reshape(1, 1).astype(jnp.float32)

    # Row tiling: large tiles amortize per-grid-step overhead; guarantee at
    # least 2 grid steps so the "parallel" axis shards across v7x's two TCs.
    np8 = _round_up(N, SUBLANE)
    steps = max(1, -(-np8 // tm_max))
    if steps < 2 and np8 >= 2 * SUBLANE:
        steps = 2
    tm = _round_up(-(-np8 // steps), SUBLANE)
    Np = steps * tm
    if Np != N:
        x = jnp.pad(x, ((0, Np - N), (0, 0)))

    kern = functools.partial(_mlp_head_kernel, neg_slope=neg_slope)
    out = pl.pallas_call(
        kern,
        out_shape=jax.ShapeDtypeStruct((Np, 1), out_dtype),
        grid=(steps,),
        in_specs=[
            pl.BlockSpec((tm, K), lambda i: (i, 0)),    # feat row tile (bf16)
            pl.BlockSpec((K, H), lambda i: (0, 0)),     # W1 (bf16, resident)
            pl.BlockSpec((1, H), lambda i: (0, 0)),     # b1 (f32)
            pl.BlockSpec((1, H), lambda i: (0, 0)),     # W2 row (f32)
            pl.BlockSpec((1, 1), lambda i: (0, 0)),     # b2 (f32)
        ],
        out_specs=pl.BlockSpec((tm, 1), lambda i: (i, 0)),
        compiler_params=pltpu.CompilerParams(
            dimension_semantics=("parallel",),
            vmem_limit_bytes=32 * 1024 * 1024),
    )(x, w1c, b1r, w2r, b2r)
    return out[:N]


# ------------------------------- parameters ----------------------------------
def init_params(key):
    # PyTorch nn.Linear default init: U(-1/sqrt(fan_in), 1/sqrt(fan_in)).
    def lin(k, fan_in, fan_out):
        kw, kb = jax.random.split(k)
        bound = 1.0 / (fan_in ** 0.5)
        w = jax.random.uniform(kw, (fan_in, fan_out), jnp.float32, -bound, bound)
        b = jax.random.uniform(kb, (fan_out,), jnp.float32, -bound, bound)
        return w, b

    k1, k2 = jax.random.split(key)
    w1, b1 = lin(k1, IN_DIM, HID_DIM)
    w2, b2 = lin(k2, HID_DIM, OUT_DIM)
    return {"w1": w1, "b1": b1, "w2": w2, "b2": b2}


# ------------------------------ pure-JAX reference ---------------------------
def mlp_head_ref(feat, params, neg_slope=NEG_SLOPE):
    h = feat @ params["w1"] + params["b1"]
    h = jnp.where(h >= 0, h, neg_slope * h)
    y = h @ params["w2"] + params["b2"]
    return jnp.maximum(y, 0.0)


if __name__ == "__main__":
    key = jax.random.PRNGKey(0)
    pkey, xkey, xkey2 = jax.random.split(key, 3)
    params = init_params(pkey)

    # Case 1: canonical small batch (batch=2) run THROUGH the Pallas kernel
    # (bypass disabled) -- bf16 GEMM vs f32 reference, loose tolerance.
    feat_small = jax.random.normal(xkey, (2, IN_DIM), jnp.float32)
    fwd_kernel = jax.jit(functools.partial(mlp_head, min_rows_for_kernel=0))
    out_small = jax.block_until_ready(fwd_kernel(feat_small, params))
    ref_small = mlp_head_ref(feat_small, params)
    assert out_small.shape == (2, OUT_DIM), out_small.shape
    assert bool(jnp.all(jnp.isfinite(out_small)))
    assert bool(jnp.all(out_small >= 0.0))                     # final ReLU
    assert bool(jnp.allclose(out_small, ref_small, atol=3e-2, rtol=3e-2)), (
        out_small, ref_small)

    # Case 2: larger batch -> multi-step "parallel" grid (dual-TC on v7x).
    feat_big = jax.random.normal(xkey2, (384, IN_DIM), jnp.float32)
    fwd = jax.jit(mlp_head)
    out_big = jax.block_until_ready(fwd(feat_big, params))
    ref_big = mlp_head_ref(feat_big, params)
    assert out_big.shape == (384, OUT_DIM), out_big.shape
    assert bool(jnp.all(jnp.isfinite(out_big)))
    assert bool(jnp.all(out_big >= 0.0))
    assert bool(jnp.allclose(out_big, ref_big, atol=3e-2, rtol=3e-2)), (
        float(jnp.max(jnp.abs(out_big - ref_big))))

    # Case 3: small-batch bypass path (pure XLA, exact f32 math).
    out_bypass = jax.block_until_ready(fwd(feat_small, params))
    assert bool(jnp.allclose(out_bypass, ref_small, atol=1e-5, rtol=1e-5))

    print("KERNEL_OK")
</pallas_src>

<mosaic_0001>
module attributes {stable_mosaic.version = 11 : i64} {
  func.func @_mlp_head_kernel(%arg0: i32, %arg1: memref<8x768xbf16, #tpu.memory_space<vmem>>, %arg2: memref<768x256xbf16, #tpu.memory_space<vmem>>, %arg3: memref<1x256xf32, #tpu.memory_space<vmem>>, %arg4: memref<1x256xf32, #tpu.memory_space<vmem>>, %arg5: memref<1x1xf32, #tpu.memory_space<vmem>>, %arg6: memref<8x1xf32, #tpu.memory_space<vmem>>) attributes {dimension_semantics = [#tpu.dimension_semantics<parallel>], iteration_bounds = array<i64: 1>, scalar_prefetch = 0 : i64, scratch_operands = 0 : i64, tpu.core_type = #tpu.core_type<tc>, window_params = [{transform_indices = @transform_0, window_bounds = array<i64: 8, 768>}, {pipeline_mode = #tpu.pipeline_mode<synchronous>, transform_indices = @transform_1, window_bounds = array<i64: 768, 256>}, {pipeline_mode = #tpu.pipeline_mode<synchronous>, transform_indices = @transform_2, window_bounds = array<i64: 1, 256>}, {pipeline_mode = #tpu.pipeline_mode<synchronous>, transform_indices = @transform_3, window_bounds = array<i64: 1, 256>}, {pipeline_mode = #tpu.pipeline_mode<synchronous>, transform_indices = @transform_4, window_bounds = array<i64: 1, 1>}, {transform_indices = @transform_5, window_bounds = array<i64: 8, 1>}]} {
    %c0 = arith.constant 0 : index
    %c0_0 = arith.constant 0 : index
    %0 = vector.load %arg1[%c0, %c0_0] : memref<8x768xbf16, #tpu.memory_space<vmem>>, vector<8x768xbf16>
    %c0_1 = arith.constant 0 : index
    %c0_2 = arith.constant 0 : index
    %1 = vector.load %arg2[%c0_1, %c0_2] : memref<768x256xbf16, #tpu.memory_space<vmem>>, vector<768x256xbf16>
    %cst = arith.constant dense<0.000000e+00> : vector<8x256xf32>
    %2 = tpu.matmul %0, %1, %cst {dimension_numbers = #tpu.dot_dimension_numbers<[1], [0], [0], [1], [0, 0, 1, 1], [], []>} : vector<8x768xbf16>, vector<768x256xbf16>, vector<8x256xf32> -> vector<8x256xf32>
    %c0_3 = arith.constant 0 : index
    %c0_4 = arith.constant 0 : index
    %3 = vector.load %arg3[%c0_3, %c0_4] : memref<1x256xf32, #tpu.memory_space<vmem>>, vector<1x256xf32>
    %4 = vector.broadcast %3 : vector<1x256xf32> to vector<8x256xf32>
    %5 = arith.addf %2, %4 : vector<8x256xf32>
    %cst_5 = arith.constant 0.000000e+00 : f32
    %6 = vector.broadcast %cst_5 : f32 to vector<8x256xf32>
    %7 = arith.cmpf oge, %5, %6 : vector<8x256xf32>
    %cst_6 = arith.constant 2.000000e-01 : f32
    %8 = vector.broadcast %cst_6 : f32 to vector<8x256xf32>
    %9 = arith.mulf %8, %5 : vector<8x256xf32>
    %10 = arith.select %7, %5, %9 : vector<8x256xi1>, vector<8x256xf32>
    %c0_7 = arith.constant 0 : index
    %c0_8 = arith.constant 0 : index
    %11 = vector.load %arg4[%c0_7, %c0_8] : memref<1x256xf32, #tpu.memory_space<vmem>>, vector<1x256xf32>
    %12 = vector.broadcast %11 : vector<1x256xf32> to vector<8x256xf32>
    %13 = arith.mulf %10, %12 : vector<8x256xf32>
    %cst_9 = arith.constant dense<0.000000e+00> : vector<8xf32>
    %14 = vector.multi_reduction <add>, %13, %cst_9 [1] : vector<8x256xf32> to vector<8xf32>
    %15 = vector.shape_cast %14 : vector<8xf32> to vector<8x1xf32>
    %c0_10 = arith.constant 0 : index
    %c0_11 = arith.constant 0 : index
    %16 = vector.load %arg5[%c0_10, %c0_11] : memref<1x1xf32, #tpu.memory_space<vmem>>, vector<1x1xf32>
    %17 = vector.broadcast %16 : vector<1x1xf32> to vector<8x1xf32>
    %18 = arith.addf %15, %17 : vector<8x1xf32>
    %cst_12 = arith.constant 0.000000e+00 : f32
    %19 = vector.broadcast %cst_12 : f32 to vector<8x1xf32>
    %20 = arith.maximumf %18, %19 : vector<8x1xf32>
    %c0_13 = arith.constant 0 : index
    %c0_14 = arith.constant 0 : index
    %21 = vector.load %arg6[%c0_13, %c0_14] : memref<8x1xf32, #tpu.memory_space<vmem>>, vector<8x1xf32>
    tpu.vector_store %arg6[%c0_13, %c0_14], %20 {strides = array<i32>} : memref<8x1xf32, #tpu.memory_space<vmem>>, vector<8x1xf32>,
    return
  }
  func.func @transform_0(%arg0: i32) -> (i32, i32) {
    %c0_i32 = arith.constant 0 : i32
    %c0_i32_0 = arith.constant 0 : i32
    return %arg0, %c0_i32 : i32, i32
  }
  func.func @transform_1(%arg0: i32) -> (i32, i32) {
    %c0_i32 = arith.constant 0 : i32
    %c0_i32_0 = arith.constant 0 : i32
    %c0_i32_1 = arith.constant 0 : i32
    return %c0_i32, %c0_i32_0 : i32, i32
  }
  func.func @transform_2(%arg0: i32) -> (i32, i32) {
    %c0_i32 = arith.constant 0 : i32
    %c0_i32_0 = arith.constant 0 : i32
    %c0_i32_1 = arith.constant 0 : i32
    return %c0_i32, %c0_i32_0 : i32, i32
  }
  func.func @transform_3(%arg0: i32) -> (i32, i32) {
    %c0_i32 = arith.constant 0 : i32
    %c0_i32_0 = arith.constant 0 : i32
    %c0_i32_1 = arith.constant 0 : i32
    return %c0_i32, %c0_i32_0 : i32, i32
  }
  func.func @transform_4(%arg0: i32) -> (i32, i32) {
    %c0_i32 = arith.constant 0 : i32
    %c0_i32_0 = arith.constant 0 : i32
    %c0_i32_1 = arith.constant 0 : i32
    return %c0_i32, %c0_i32_0 : i32, i32
  }
  func.func @transform_5(%arg0: i32) -> (i32, i32) {
    %c0_i32 = arith.constant 0 : i32
    %c0_i32_0 = arith.constant 0 : i32
    return %arg0, %c0_i32 : i32, i32
  }
}

</mosaic_0001>

<llo_original>
// kernel: mlp_head.1
$region0: #{mlp_head.1}
  #allocation0 [shape = 'u32[]', space=smem, size = 0x4, offset = 0x4, fixed_abs, tag = 'smem constant byte address 0x4 - core index']
  #allocation1 [shape = 'u32[144,128]{1,0:T(1,128)}', space=vmem, size = 0x12000, scoped, tag = 'internal scratch']
  #allocation2 [shape = 'f32[1,1]{1,0:T(1,128)S(1)}', space=vmem, size = 0x200, scoped, tag = 'scoped memory for mlp_head.1']
  %s0 = inlined_call_operand.vmem [shape: bf16[8,768], index: 0, kind: input, shape index: {}]
  %s1 = inlined_call_operand.vmem [shape: bf16[768,256], index: 1, kind: input, shape index: {}]
  %s2 = inlined_call_operand.vmem [shape: f32[1,256], index: 2, kind: input, shape index: {}]
  %s3 = inlined_call_operand.vmem [shape: f32[1,256], index: 3, kind: input, shape index: {}]
  %s4 = inlined_call_operand.<no memory space> [shape: f32[1,1], index: 4, kind: input, shape index: {}]
  %s5 = inlined_call_operand.vmem [shape: f32[8,1], index: 5, kind: output, shape index: {}]
  %s6 = sld [smem:[#allocation0]]
  $region30: #{mlp_head.1} parent=0
    _
  %s8 = ssub.s32 1, %s6
  %s9 = scalar_select 0, %s8, %s6
  %v10 = vstv %s4
  %11 = vst [vmem:[#allocation2] sm:$0x1] %v10
  // Predicated region
  $region2: #{mlp_head.1} parent=0 // pred_check
    _
  $region3: #{mlp_head.1} parent=0 // pred_check_branch
    %13 = sbr.rel (0) target = $region5
  $region4: #{mlp_head.1} parent=0 // pred_region
    _
  $region5: #{mlp_head.1} parent=0 // pred_fallthru
    _
  // Predicated region
  $region6: #{mlp_head.1} parent=0 // pred_check
    _
  $region7: #{mlp_head.1} parent=0 // pred_check_branch
    %15 = sbr.rel (0) target = $region9
  $region8: #{mlp_head.1} parent=0 // pred_region
    _
  $region9: #{mlp_head.1} parent=0 // pred_fallthru
    _
  // Predicated region
  $region10: #{mlp_head.1} parent=0 // pred_check
    _
  $region11: #{mlp_head.1} parent=0 // pred_check_branch
    %17 = sbr.rel (0) target = $region13
  $region12: #{mlp_head.1} parent=0 // pred_region
    _
  $region13: #{mlp_head.1} parent=0 // pred_fallthru
    _
  // Predicated region
  $region14: #{mlp_head.1} parent=0 // pred_check
    _
  $region15: #{mlp_head.1} parent=0 // pred_check_branch
    %19 = sbr.rel (0) target = $region17
  $region16: #{mlp_head.1} parent=0 // pred_region
    _
  $region17: #{mlp_head.1} parent=0 // pred_fallthru
    _
  // Predicated region
  $region18: #{mlp_head.1} parent=0 // pred_check
    _
  $region19: #{mlp_head.1} parent=0 // pred_check_branch
    %21 = sbr.rel (0) target = $region21
  $region20: #{mlp_head.1} parent=0 // pred_region
    _
  $region21: #{mlp_head.1} parent=0 // pred_fallthru
    _
  %v22 = vld [vmem:[%s0] sm:$0xff]
  %v23 = vld [vmem:[%s0 + $0x8] sm:$0xff]
  %v24 = vld [vmem:[%s0 + $0x10] sm:$0xff]
  %v25 = vld [vmem:[%s1] sm:$0xff]
  %v26 = vld [vmem:[%s1 + $0x8] sm:$0xff]
  %v27 = vld [vmem:[%s1 + $0x10] sm:$0xff]
  %v28 = vld [vmem:[%s1 + $0x18] sm:$0xff]
  %v29 = vld [vmem:[%s1 + $0x20] sm:$0xff]
  %v30 = vld [vmem:[%s1 + $0x28] sm:$0xff]
  %v31 = vld [vmem:[%s1 + $0x30] sm:$0xff]
  %v32 = vld [vmem:[%s1 + $0x38] sm:$0xff]
  %v33 = vld [vmem:[%s1 + $0x40] sm:$0xff]
  %v34 = vld [vmem:[%s1 + $0x48] sm:$0xff]
  %v35 = vld [vmem:[%s1 + $0x50] sm:$0xff]
  %v36 = vld [vmem:[%s1 + $0x58] sm:$0xff]
  %v37 = vld [vmem:[%s1 + $0x60] sm:$0xff]
  %v38 = vld [vmem:[%s1 + $0x68] sm:$0xff]
  %v39 = vld [vmem:[%s1 + $0x70] sm:$0xff]
  %v40 = vld [vmem:[%s1 + $0x78] sm:$0xff]
  %v41 = vld [vmem:[%s1 + $0x80] sm:$0xff]
  %v42 = vld [vmem:[%s1 + $0x88] sm:$0xff]
  %v43 = vld [vmem:[%s1 + $0x90] sm:$0xff]
  %v44 = vld [vmem:[%s1 + $0x98] sm:$0xff]
  %v45 = vld [vmem:[%s1 + $0xa0] sm:$0xff]
  %v46 = vld [vmem:[%s1 + $0xa8] sm:$0xff]
  %v47 = vld [vmem:[%s1 + $0xb0] sm:$0xff]
  %v48 = vld [vmem:[%s1 + $0xb8] sm:$0xff]
  %v49 = vld [vmem:[%s1 + $0xc0] sm:$0xff]
  %v50 = vld [vmem:[%s1 + $0xc8] sm:$0xff]
  %v51 = vld [vmem:[%s1 + $0xd0] sm:$0xff]
  %v52 = vld [vmem:[%s1 + $0xd8] sm:$0xff]
  %v53 = vld [vmem:[%s1 + $0xe0] sm:$0xff]
  %v54 = vld [vmem:[%s1 + $0xe8] sm:$0xff]
  %v55 = vld [vmem:[%s1 + $0xf0] sm:$0xff]
  %v56 = vld [vmem:[%s1 + $0xf8] sm:$0xff]
  %v57 = vld [vmem:[%s1 + $0x100] sm:$0xff]
  %v58 = vld [vmem:[%s1 + $0x108] sm:$0xff]
  %v59 = vld [vmem:[%s1 + $0x110] sm:$0xff]
  %v60 = vld [vmem:[%s1 + $0x118] sm:$0xff]
  %v61 = vld [vmem:[%s1 + $0x120] sm:$0xff]
  %v62 = vld [vmem:[%s1 + $0x128] sm:$0xff]
  %v63 = vld [vmem:[%s1 + $0x130] sm:$0xff]
  %v64 = vld [vmem:[%s1 + $0x138] sm:$0xff]
  %v65 = vld [vmem:[%s1 + $0x140] sm:$0xff]
  %v66 = vld [vmem:[%s1 + $0x148] sm:$0xff]
  %v67 = vld [vmem:[%s1 + $0x150] sm:$0xff]
  %v68 = vld [vmem:[%s1 + $0x158] sm:$0xff]
  %v69 = vld [vmem:[%s1 + $0x160] sm:$0xff]
  %v70 = vld [vmem:[%s1 + $0x168] sm:$0xff]
  %v71 = vld [vmem:[%s1 + $0x170] sm:$0xff]
  %v72 = vld [vmem:[%s1 + $0x178] sm:$0xff]
  %v73 = vld [vmem:[%s1 + $0x180] sm:$0xff]
  %v74 = vld [vmem:[%s1 + $0x188] sm:$0xff]
  %v75 = vld [vmem:[%s1 + $0x190] sm:$0xff]
  %v76 = vld [vmem:[%s1 + $0x198] sm:$0xff]
  %v77 = vld [vmem:[%s1 + $0x1a0] sm:$0xff]
  %v78 = vld [vmem:[%s1 + $0x1a8] sm:$0xff]
  %v79 = vld [vmem:[%s1 + $0x1b0] sm:$0xff]
  %v80 = vld [vmem:[%s1 + $0x1b8] sm:$0xff]
  %v81 = vld [vmem:[%s1 + $0x1c0] sm:$0xff]
  %v82 = vld [vmem:[%s1 + $0x1c8] sm:$0xff]
  %v83 = vld [vmem:[%s1 + $0x1d0] sm:$0xff]
  %v84 = vld [vmem:[%s1 + $0x1d8] sm:$0xff]
  %v85 = vld [vmem:[%s1 + $0x1e0] sm:$0xff]
  %v86 = vld [vmem:[%s1 + $0x1e8] sm:$0xff]
  %v87 = vld [vmem:[%s1 + $0x1f0] sm:$0xff]
  %v88 = vld [vmem:[%s1 + $0x1f8] sm:$0xff]
  %v89 = vld [vmem:[%s1 + $0x200] sm:$0xff]
  %v90 = vld [vmem:[%s1 + $0x208] sm:$0xff]
  %v91 = vld [vmem:[%s1 + $0x210] sm:$0xff]
  %v92 = vld [vmem:[%s1 + $0x218] sm:$0xff]
  %v93 = vld [vmem:[%s1 + $0x220] sm:$0xff]
  %v94 = vld [vmem:[%s1 + $0x228] sm:$0xff]
  %v95 = vld [vmem:[%s1 + $0x230] sm:$0xff]
  %v96 = vld [vmem:[%s1 + $0x238] sm:$0xff]
  %v97 = vld [vmem:[%s1 + $0x240] sm:$0xff]
  %v98 = vld [vmem:[%s1 + $0x248] sm:$0xff]
  %v99 = vld [vmem:[%s1 + $0x250] sm:$0xff]
  %v100 = vld [vmem:[%s1 + $0x258] sm:$0xff]
  %v101 = vld [vmem:[%s1 + $0x260] sm:$0xff]
  %v102 = vld [vmem:[%s1 + $0x268] sm:$0xff]
  %v103 = vld [vmem:[%s1 + $0x270] sm:$0xff]
  %v104 = vld [vmem:[%s1 + $0x278] sm:$0xff]
  %v105 = vld [vmem:[%s1 + $0x280] sm:$0xff]
  %v106 = vld [vmem:[%s1 + $0x288] sm:$0xff]
  %v107 = vld [vmem:[%s1 + $0x290] sm:$0xff]
  %v108 = vld [vmem:[%s1 + $0x298] sm:$0xff]
  %v109 = vld [vmem:[%s1 + $0x2a0] sm:$0xff]
  %v110 = vld [vmem:[%s1 + $0x2a8] sm:$0xff]
  %v111 = vld [vmem:[%s1 + $0x2b0] sm:$0xff]
  %v112 = vld [vmem:[%s1 + $0x2b8] sm:$0xff]
  %v113 = vld [vmem:[%s1 + $0x2c0] sm:$0xff]
  %v114 = vld [vmem:[%s1 + $0x2c8] sm:$0xff]
  %v115 = vld [vmem:[%s1 + $0x2d0] sm:$0xff]
  %v116 = vld [vmem:[%s1 + $0x2d8] sm:$0xff]
  %v117 = vld [vmem:[%s1 + $0x2e0] sm:$0xff]
  %v118 = vld [vmem:[%s1 + $0x2e8] sm:$0xff]
  %v119 = vld [vmem:[%s1 + $0x2f0] sm:$0xff]
  %v120 = vld [vmem:[%s1 + $0x2f8] sm:$0xff]
  %v121 = vld [vmem:[%s2] sm:$0x3]
  %v123 = vlaneseq
  %v124 = vshrl.u32 %v123, 7
  %v125 = vsub.s32 0, %v124
  %v126 = vrot.slane %v121, %v125
  %v127 = vlaneseq
  %v128 = vshrl.u32 %v127, 7
  %v129 = vsub.s32 1, %v128
  %v130 = vrot.slane %v121, %v129
  %v136 = vunpack.c.l.b16 %v22
  %v137 = vunpack.c.h.b16 %v22
  %v138 = vunpack.c.l.b16 %v23
  %v139 = vunpack.c.h.b16 %v23
  %v140 = vunpack.c.l.b16 %v24
  %v141 = vunpack.c.h.b16 %v24
  %v142 = vpack.c.b16 %v136, %v136
  %v143 = vpack.c.b16 %v137, %v137
  %v144 = vpack.c.b16 %v138, %v138
  %v145 = vpack.c.b16 %v139, %v139
  %v146 = vpack.c.b16 %v140, %v140
  %v147 = vpack.c.b16 %v141, %v141
  %v250 = vunpack.c.l.b16 %v25
  %v251 = vunpack.c.h.b16 %v25
  %v252 = vunpack.c.l.b16 %v26
  %v253 = vunpack.c.h.b16 %v26
  %v254 = vunpack.c.l.b16 %v27
  %v255 = vunpack.c.h.b16 %v27
  %v256 = vunpack.c.l.b16 %v28
  %v257 = vunpack.c.h.b16 %v28
  %v258 = vunpack.c.l.b16 %v29
  %v259 = vunpack.c.h.b16 %v29
  %v260 = vunpack.c.l.b16 %v30
  %v261 = vunpack.c.h.b16 %v30
  %v262 = vunpack.c.l.b16 %v31
  %v263 = vunpack.c.h.b16 %v31
  %v264 = vunpack.c.l.b16 %v32
  %v265 = vunpack.c.h.b16 %v32
  %v266 = vunpack.c.l.b16 %v33
  %v267 = vunpack.c.h.b16 %v33
  %v268 = vunpack.c.l.b16 %v34
  %v269 = vunpack.c.h.b16 %v34
  %v270 = vunpack.c.l.b16 %v35
  %v271 = vunpack.c.h.b16 %v35
  %v272 = vunpack.c.l.b16 %v36
  %v273 = vunpack.c.h.b16 %v36
  %v274 = vunpack.c.l.b16 %v37
  %v275 = vunpack.c.h.b16 %v37
  %v276 = vunpack.c.l.b16 %v38
  %v277 = vunpack.c.h.b16 %v38
  %v278 = vunpack.c.l.b16 %v39
  %v279 = vunpack.c.h.b16 %v39
  %v280 = vunpack.c.l.b16 %v40
  %v281 = vunpack.c.h.b16 %v40
  %v282 = vunpack.c.l.b16 %v41
  %v283 = vunpack.c.h.b16 %v41
  %v284 = vunpack.c.l.b16 %v42
  %v285 = vunpack.c.h.b16 %v42
  %v286 = vunpack.c.l.b16 %v43
  %v287 = vunpack.c.h.b16 %v43
  %v288 = vunpack.c.l.b16 %v44
  %v289 = vunpack.c.h.b16 %v44
  %v290 = vunpack.c.l.b16 %v45
  %v291 = vunpack.c.h.b16 %v45
  %v292 = vunpack.c.l.b16 %v46
  %v293 = vunpack.c.h.b16 %v46
  %v294 = vunpack.c.l.b16 %v47
  %v295 = vunpack.c.h.b16 %v47
  %v296 = vunpack.c.l.b16 %v48
  %v297 = vunpack.c.h.b16 %v48
  %v298 = vunpack.c.l.b16 %v49
  %v299 = vunpack.c.h.b16 %v49
  %v300 = vunpack.c.l.b16 %v50
  %v301 = vunpack.c.h.b16 %v50
  %v302 = vunpack.c.l.b16 %v51
  %v303 = vunpack.c.h.b16 %v51
  %v304 = vunpack.c.l.b16 %v52
  %v305 = vunpack.c.h.b16 %v52
  %v306 = vunpack.c.l.b16 %v53
  %v307 = vunpack.c.h.b16 %v53
  %v308 = vunpack.c.l.b16 %v54
  %v309 = vunpack.c.h.b16 %v54
  %v310 = vunpack.c.l.b16 %v55
  %v311 = vunpack.c.h.b16 %v55
  %v312 = vunpack.c.l.b16 %v56
  %v313 = vunpack.c.h.b16 %v56
  %v314 = vunpack.c.l.b16 %v57
  %v315 = vunpack.c.h.b16 %v57
  %v316 = vunpack.c.l.b16 %v58
  %v317 = vunpack.c.h.b16 %v58
  %v318 = vunpack.c.l.b16 %v59
  %v319 = vunpack.c.h.b16 %v59
  %v320 = vunpack.c.l.b16 %v60
  %v321 = vunpack.c.h.b16 %v60
  %v322 = vunpack.c.l.b16 %v61
  %v323 = vunpack.c.h.b16 %v61
  %v324 = vunpack.c.l.b16 %v62
  %v325 = vunpack.c.h.b16 %v62
  %v326 = vunpack.c.l.b16 %v63
  %v327 = vunpack.c.h.b16 %v63
  %v328 = vunpack.c.l.b16 %v64
  %v329 = vunpack.c.h.b16 %v64
  %v330 = vunpack.c.l.b16 %v65
  %v331 = vunpack.c.h.b16 %v65
  %v332 = vunpack.c.l.b16 %v66
  %v333 = vunpack.c.h.b16 %v66
  %v334 = vunpack.c.l.b16 %v67
  %v335 = vunpack.c.h.b16 %v67
  %v336 = vunpack.c.l.b16 %v68
  %v337 = vunpack.c.h.b16 %v68
  %v338 = vunpack.c.l.b16 %v69
  %v339 = vunpack.c.h.b16 %v69
  %v340 = vunpack.c.l.b16 %v70
  %v341 = vunpack.c.h.b16 %v70
  %v342 = vunpack.c.l.b16 %v71
  %v343 = vunpack.c.h.b16 %v71
  %v344 = vunpack.c.l.b16 %v72
  %v345 = vunpack.c.h.b16 %v72
  %v346 = vunpack.c.l.b16 %v73
  %v347 = vunpack.c.h.b16 %v73
  %v348 = vunpack.c.l.b16 %v74
  %v349 = vunpack.c.h.b16 %v74
  %v350 = vunpack.c.l.b16 %v75
  %v351 = vunpack.c.h.b16 %v75
  %v352 = vunpack.c.l.b16 %v76
  %v353 = vunpack.c.h.b16 %v76
  %v354 = vunpack.c.l.b16 %v77
  %v355 = vunpack.c.h.b16 %v77
  %v356 = vunpack.c.l.b16 %v78
  %v357 = vunpack.c.h.b16 %v78
  %v358 = vunpack.c.l.b16 %v79
  %v359 = vunpack.c.h.b16 %v79
  %v360 = vunpack.c.l.b16 %v80
  %v361 = vunpack.c.h.b16 %v80
  %v362 = vunpack.c.l.b16 %v81
  %v363 = vunpack.c.h.b16 %v81
  %v364 = vunpack.c.l.b16 %v82
  %v365 = vunpack.c.h.b16 %v82
  %v366 = vunpack.c.l.b16 %v83
  %v367 = vunpack.c.h.b16 %v83
  %v368 = vunpack.c.l.b16 %v84
  %v369 = vunpack.c.h.b16 %v84
  %v370 = vunpack.c.l.b16 %v85
  %v371 = vunpack.c.h.b16 %v85
  %v372 = vunpack.c.l.b16 %v86
  %v373 = vunpack.c.h.b16 %v86
  %v374 = vunpack.c.l.b16 %v87
  %v375 = vunpack.c.h.b16 %v87
  %v376 = vunpack.c.l.b16 %v88
  %v377 = vunpack.c.h.b16 %v88
  %v378 = vunpack.c.l.b16 %v89
  %v379 = vunpack.c.h.b16 %v89
  %v380 = vunpack.c.l.b16 %v90
  %v381 = vunpack.c.h.b16 %v90
  %v382 = vunpack.c.l.b16 %v91
  %v383 = vunpack.c.h.b16 %v91
  %v384 = vunpack.c.l.b16 %v92
  %v385 = vunpack.c.h.b16 %v92
  %v386 = vunpack.c.l.b16 %v93
  %v387 = vunpack.c.h.b16 %v93
  %v388 = vunpack.c.l.b16 %v94
  %v389 = vunpack.c.h.b16 %v94
  %v390 = vunpack.c.l.b16 %v95
  %v391 = vunpack.c.h.b16 %v95
  %v392 = vunpack.c.l.b16 %v96
  %v393 = vunpack.c.h.b16 %v96
  %v394 = vunpack.c.l.b16 %v97
  %v395 = vunpack.c.h.b16 %v97
  %v396 = vunpack.c.l.b16 %v98
  %v397 = vunpack.c.h.b16 %v98
  %v398 = vunpack.c.l.b16 %v99
  %v399 = vunpack.c.h.b16 %v99
  %v400 = vunpack.c.l.b16 %v100
  %v401 = vunpack.c.h.b16 %v100
  %v402 = vunpack.c.l.b16 %v101
  %v403 = vunpack.c.h.b16 %v101
  %v404 = vunpack.c.l.b16 %v102
  %v405 = vunpack.c.h.b16 %v102
  %v406 = vunpack.c.l.b16 %v103
  %v407 = vunpack.c.h.b16 %v103
  %v408 = vunpack.c.l.b16 %v104
  %v409 = vunpack.c.h.b16 %v104
  %v410 = vunpack.c.l.b16 %v105
  %v411 = vunpack.c.h.b16 %v105
  %v412 = vunpack.c.l.b16 %v106
  %v413 = vunpack.c.h.b16 %v106
  %v414 = vunpack.c.l.b16 %v107
  %v415 = vunpack.c.h.b16 %v107
  %v416 = vunpack.c.l.b16 %v108
  %v417 = vunpack.c.h.b16 %v108
  %v418 = vunpack.c.l.b16 %v109
  %v419 = vunpack.c.h.b16 %v109
  %v420 = vunpack.c.l.b16 %v110
  %v421 = vunpack.c.h.b16 %v110
  %v422 = vunpack.c.l.b16 %v111
  %v423 = vunpack.c.h.b16 %v111
  %v424 = vunpack.c.l.b16 %v112
  %v425 = vunpack.c.h.b16 %v112
  %v426 = vunpack.c.l.b16 %v113
  %v427 = vunpack.c.h.b16 %v113
  %v428 = vunpack.c.l.b16 %v114
  %v429 = vunpack.c.h.b16 %v114
  %v430 = vunpack.c.l.b16 %v115
  %v431 = vunpack.c.h.b16 %v115
  %v432 = vunpack.c.l.b16 %v116
  %v433 = vunpack.c.h.b16 %v116
  %v434 = vunpack.c.l.b16 %v117
  %v435 = vunpack.c.h.b16 %v117
  %v436 = vunpack.c.l.b16 %v118
  %v437 = vunpack.c.h.b16 %v118
  %v438 = vunpack.c.l.b16 %v119
  %v439 = vunpack.c.h.b16 %v119
  %v440 = vunpack.c.l.b16 %v120
  %v441 = vunpack.c.h.b16 %v120
  %v442 = vpack.c.b16 %v252, %v250
  %v443 = vpack.c.b16 %v253, %v251
  %v444 = vpack.c.b16 %v256, %v254
  %v445 = vpack.c.b16 %v257, %v255
  %v446 = vpack.c.b16 %v260, %v258
  %v447 = vpack.c.b16 %v261, %v259
  %v448 = vpack.c.b16 %v264, %v262
  %v449 = vpack.c.b16 %v265, %v263
  %v450 = vpack.c.b16 %v268, %v266
  %v451 = vpack.c.b16 %v269, %v267
  %v452 = vpack.c.b16 %v272, %v270
  %v453 = vpack.c.b16 %v273, %v271
  %v454 = vpack.c.b16 %v276, %v274
  %v455 = vpack.c.b16 %v277, %v275
  %v456 = vpack.c.b16 %v280, %v278
  %v457 = vpack.c.b16 %v281, %v279
  %v458 = vpack.c.b16 %v284, %v282
  %v459 = vpack.c.b16 %v285, %v283
  %v460 = vpack.c.b16 %v288, %v286
  %v461 = vpack.c.b16 %v289, %v287
  %v462 = vpack.c.b16 %v292, %v290
  %v463 = vpack.c.b16 %v293, %v291
  %v464 = vpack.c.b16 %v296, %v294
  %v465 = vpack.c.b16 %v297, %v295
  %v466 = vpack.c.b16 %v300, %v298
  %v467 = vpack.c.b16 %v301, %v299
  %v468 = vpack.c.b16 %v304, %v302
  %v469 = vpack.c.b16 %v305, %v303
  %v470 = vpack.c.b16 %v308, %v306
  %v471 = vpack.c.b16 %v309, %v307
  %v472 = vpack.c.b16 %v312, %v310
  %v473 = vpack.c.b16 %v313, %v311
  %v474 = vpack.c.b16 %v316, %v314
  %v475 = vpack.c.b16 %v317, %v315
  %v476 = vpack.c.b16 %v320, %v318
  %v477 = vpack.c.b16 %v321, %v319
  %v478 = vpack.c.b16 %v324, %v322
  %v479 = vpack.c.b16 %v325, %v323
  %v480 = vpack.c.b16 %v328, %v326
  %v481 = vpack.c.b16 %v329, %v327
  %v482 = vpack.c.b16 %v332, %v330
  %v483 = vpack.c.b16 %v333, %v331
  %v484 = vpack.c.b16 %v336, %v334
  %v485 = vpack.c.b16 %v337, %v335
  %v486 = vpack.c.b16 %v340, %v338
  %v487 = vpack.c.b16 %v341, %v339
  %v488 = vpack.c.b16 %v344, %v342
  %v489 = vpack.c.b16 %v345, %v343
  %v490 = vpack.c.b16 %v348, %v346
  %v491 = vpack.c.b16 %v349, %v347
  %v492 = vpack.c.b16 %v352, %v350
  %v493 = vpack.c.b16 %v353, %v351
  %v494 = vpack.c.b16 %v356, %v354
  %v495 = vpack.c.b16 %v357, %v355
  %v496 = vpack.c.b16 %v360, %v358
  %v497 = vpack.c.b16 %v361, %v359
  %v498 = vpack.c.b16 %v364, %v362
  %v499 = vpack.c.b16 %v365, %v363
  %v500 = vpack.c.b16 %v368, %v366
  %v501 = vpack.c.b16 %v369, %v367
  %v502 = vpack.c.b16 %v372, %v370
  %v503 = vpack.c.b16 %v373, %v371
  %v504 = vpack.c.b16 %v376, %v374
  %v505 = vpack.c.b16 %v377, %v375
  %v506 = vpack.c.b16 %v380, %v378
  %v507 = vpack.c.b16 %v381, %v379
  %v508 = vpack.c.b16 %v384, %v382
  %v509 = vpack.c.b16 %v385, %v383
  %v510 = vpack.c.b16 %v388, %v386
  %v511 = vpack.c.b16 %v389, %v387
  %v512 = vpack.c.b16 %v392, %v390
  %v513 = vpack.c.b16 %v393, %v391
  %v514 = vpack.c.b16 %v396, %v394
  %v515 = vpack.c.b16 %v397, %v395
  %v516 = vpack.c.b16 %v400, %v398
  %v517 = vpack.c.b16 %v401, %v399
  %v518 = vpack.c.b16 %v404, %v402
  %v519 = vpack.c.b16 %v405, %v403
  %v520 = vpack.c.b16 %v408, %v406
  %v521 = vpack.c.b16 %v409, %v407
  %v522 = vpack.c.b16 %v412, %v410
  %v523 = vpack.c.b16 %v413, %v411
  %v524 = vpack.c.b16 %v416, %v414
  %v525 = vpack.c.b16 %v417, %v415
  %v526 = vpack.c.b16 %v420, %v418
  %v527 = vpack.c.b16 %v421, %v419
  %v528 = vpack.c.b16 %v424, %v422
  %v529 = vpack.c.b16 %v425, %v423
  %v530 = vpack.c.b16 %v428, %v426
  %v531 = vpack.c.b16 %v429, %v427
  %v532 = vpack.c.b16 %v432, %v430
  %v533 = vpack.c.b16 %v433, %v431
  %v534 = vpack.c.b16 %v436, %v434
  %v535 = vpack.c.b16 %v437, %v435
  %v536 = vpack.c.b16 %v440, %v438
  %v537 = vpack.c.b16 %v441, %v439
  %634 = vmatprep.subr.bf16.mxu0 %v457
  %635 = vmatpush1.bf16.msra.mxu0 %v456
  %636 = vmatprep.subr.bf16.mxu0 %v455
  %637 = vmatpush1.bf16.msra.mxu0 %v454
  %638 = vmatprep.subr.bf16.mxu0 %v453
  %639 = vmatpush1.bf16.msra.mxu0 %v452
  %640 = vmatprep.subr.bf16.mxu0 %v451
  %641 = vmatpush1.bf16.msra.mxu0 %v450
  %642 = vmatprep.subr.bf16.mxu0 %v449
  %643 = vmatpush1.bf16.msra.mxu0 %v448
  %644 = vmatprep.subr.bf16.mxu0 %v447
  %645 = vmatpush1.bf16.msra.mxu0 %v446
  %646 = vmatprep.subr.bf16.mxu0 %v445
  %647 = vmatpush1.bf16.msra.mxu0 %v444
  %648 = vmatprep.subr.bf16.mxu0 %v443
  %649 = vmatpush1.bf16.msra.mxu0 %v442
  %650 = vmatprep.subr.bf16.mxu0 %v473
  %651 = vmatpush2.bf16.msra.mxu0 %v472
  %652 = vmatprep.subr.bf16.mxu0 %v471
  %653 = vmatpush2.bf16.msra.mxu0 %v470
  %654 = vmatprep.subr.bf16.mxu0 %v469
  %655 = vmatpush2.bf16.msra.mxu0 %v468
  %656 = vmatprep.subr.bf16.mxu0 %v467
  %657 = vmatpush2.bf16.msra.mxu0 %v466
  %658 = vmatprep.subr.bf16.mxu0 %v465
  %659 = vmatpush2.bf16.msra.mxu0 %v464
  %660 = vmatprep.subr.bf16.mxu0 %v463
  %661 = vmatpush2.bf16.msra.mxu0 %v462
  %662 = vmatprep.subr.bf16.mxu0 %v461
  %663 = vmatpush2.bf16.msra.mxu0 %v460
  %664 = vmatprep.subr.bf16.mxu0 %v459
  %665 = vmatpush2.bf16.msra.mxu0 %v458
  %666 = vmatprep.mubr.bf16.mxu0 %v143
  %667 = vmatmul.mubr.bf16.gmra.mxu0 %v142
  %v668 = vpop.f32.mrf.mxu0
  %v669 = vadd.f32 %v126, %v668
  %v670 = vpop.f32.mrf.mxu0
  %v671 = vadd.f32 %v130, %v670
  %v672 = vpop.f32.mrf.mxu0
  %v673 = vpop.f32.mrf.mxu0
  %674 = vdwg.mxu0
  %675 = vmatprep.subr.bf16.mxu0 %v489
  %676 = vmatpush1.bf16.msra.mxu0 %v488
  %677 = vmatprep.subr.bf16.mxu0 %v487
  %678 = vmatpush1.bf16.msra.mxu0 %v486
  %679 = vmatprep.subr.bf16.mxu0 %v485
  %680 = vmatpush1.bf16.msra.mxu0 %v484
  %681 = vmatprep.subr.bf16.mxu0 %v483
  %682 = vmatpush1.bf16.msra.mxu0 %v482
  %683 = vmatprep.subr.bf16.mxu0 %v481
  %684 = vmatpush1.bf16.msra.mxu0 %v480
  %685 = vmatprep.subr.bf16.mxu0 %v479
  %686 = vmatpush1.bf16.msra.mxu0 %v478
  %687 = vmatprep.subr.bf16.mxu0 %v477
  %688 = vmatpush1.bf16.msra.mxu0 %v476
  %689 = vmatprep.subr.bf16.mxu0 %v475
  %690 = vmatpush1.bf16.msra.mxu0 %v474
  %691 = vmatprep.subr.bf16.mxu0 %v505
  %692 = vmatpush2.bf16.msra.mxu0 %v504
  %693 = vmatprep.subr.bf16.mxu0 %v503
  %694 = vmatpush2.bf16.msra.mxu0 %v502
  %695 = vmatprep.subr.bf16.mxu0 %v501
  %696 = vmatpush2.bf16.msra.mxu0 %v500
  %697 = vmatprep.subr.bf16.mxu0 %v499
  %698 = vmatpush2.bf16.msra.mxu0 %v498
  %699 = vmatprep.subr.bf16.mxu0 %v497
  %700 = vmatpush2.bf16.msra.mxu0 %v496
  %701 = vmatprep.subr.bf16.mxu0 %v495
  %702 = vmatpush2.bf16.msra.mxu0 %v494
  %703 = vmatprep.subr.bf16.mxu0 %v493
  %704 = vmatpush2.bf16.msra.mxu0 %v492
  %705 = vmatprep.subr.bf16.mxu0 %v491
  %706 = vmatpush2.bf16.msra.mxu0 %v490
  %707 = vmatprep.mubr.bf16.mxu0 %v145
  %708 = vmatmul.mubr.bf16.gmra.mxu0 %v144
  %v709 = vpop.f32.mrf.mxu0
  %v710 = vadd.f32 %v669, %v709
  %v711 = vpop.f32.mrf.mxu0
  %v712 = vadd.f32 %v671, %v711
  %v713 = vpop.f32.mrf.mxu0
  %v714 = vpop.f32.mrf.mxu0
  %715 = vdwg.mxu0
  %716 = vmatprep.subr.bf16.mxu0 %v521
  %717 = vmatpush1.bf16.msra.mxu0 %v520
  %718 = vmatprep.subr.bf16.mxu0 %v519
  %719 = vmatpush1.bf16.msra.mxu0 %v518
  %720 = vmatprep.subr.bf16.mxu0 %v517
  %721 = vmatpush1.bf16.msra.mxu0 %v516
  %722 = vmatprep.subr.bf16.mxu0 %v515
  %723 = vmatpush1.bf16.msra.mxu0 %v514
  %724 = vmatprep.subr.bf16.mxu0 %v513
  %725 = vmatpush1.bf16.msra.mxu0 %v512
  %726 = vmatprep.subr.bf16.mxu0 %v511
  %727 = vmatpush1.bf16.msra.mxu0 %v510
  %728 = vmatprep.subr.bf16.mxu0 %v509
  %729 = vmatpush1.bf16.msra.mxu0 %v508
  %730 = vmatprep.subr.bf16.mxu0 %v507
  %731 = vmatpush1.bf16.msra.mxu0 %v506
  %732 = vmatprep.subr.bf16.mxu0 %v537
  %733 = vmatpush2.bf16.msra.mxu0 %v536
  %734 = vmatprep.subr.bf16.mxu0 %v535
  %735 = vmatpush2.bf16.msra.mxu0 %v534
  %736 = vmatprep.subr.bf16.mxu0 %v533
  %737 = vmatpush2.bf16.msra.mxu0 %v532
  %738 = vmatprep.subr.bf16.mxu0 %v531
  %739 = vmatpush2.bf16.msra.mxu0 %v530
  %740 = vmatprep.subr.bf16.mxu0 %v529
  %741 = vmatpush2.bf16.msra.mxu0 %v528
  %742 = vmatprep.subr.bf16.mxu0 %v527
  %743 = vmatpush2.bf16.msra.mxu0 %v526
  %744 = vmatprep.subr.bf16.mxu0 %v525
  %745 = vmatpush2.bf16.msra.mxu0 %v524
  %746 = vmatprep.subr.bf16.mxu0 %v523
  %747 = vmatpush2.bf16.msra.mxu0 %v522
  %748 = vmatprep.mubr.bf16.mxu0 %v147
  %749 = vmatmul.mubr.bf16.gmra.mxu0 %v146
  %v750 = vpop.f32.mrf.mxu0
  %v751 = vadd.f32 %v710, %v750
  %v752 = vpop.f32.mrf.mxu0
  %v753 = vadd.f32 %v712, %v752
  %v754 = vpop.f32.mrf.mxu0
  %v755 = vpop.f32.mrf.mxu0
  %756 = vdwg.mxu0
  %vm757 = vcmp.ge.f32.partialorder %v751, 0.0
  %vm758 = vcmp.ge.f32.partialorder %v753, 0.0
  %v759 = vmul.f32 %v751, 0.2
  %v760 = vmul.f32 %v753, 0.2
  %v761 = vsel %vm757, %v751, %v759
  %v762 = vsel %vm758, %v753, %v760
  %v763 = vld [vmem:[%s3] sm:$0x3]
  %v765 = vlaneseq
  %v766 = vshrl.u32 %v765, 7
  %v767 = vsub.s32 0, %v766
  %v768 = vrot.slane %v763, %v767
  %v769 = vlaneseq
  %v770 = vshrl.u32 %v769, 7
  %v771 = vsub.s32 1, %v770
  %v772 = vrot.slane %v763, %v771
  %v775 = vmul.f32 %v761, %v768
  %v776 = vmul.f32 %v762, %v772
  %v777 = vadd.f32 %v775, %v776
  %778 = vadd.xlane.f32.xlu0 %v777
  %v779 = vpop.xlane.xlu0 %778
  %v780 = vld [vmem:[#allocation2] sm:$0x1]
  %v782 = vlaneseq
  %v783 = vshrl.u32 %v782, 7
  %v784 = vsub.s32 0, %v783
  %v785 = vrot.slane %v780, %v784
  %v787 = vadd.f32 %v779, %v785
  %v788 = vmax.f32 %v787, 0.0
  %vm789 = vcmask 7168
  %790 = vst.msk [vmem:[%s5] sm:$0xff] %vm789, %v788
  // Predicated region
  $region22: #{mlp_head.1} parent=0 // pred_check
    _
  $region23: #{mlp_head.1} parent=0 // pred_check_branch
    %792 = sbr.rel (0) target = $region25
  $region24: #{mlp_head.1} parent=0 // pred_region
    _
  $region25: #{mlp_head.1} parent=0 // pred_fallthru
    _
  // Predicated region
  $region26: #{mlp_head.1} parent=0 // pred_check
    _
  $region27: #{mlp_head.1} parent=0 // pred_check_branch
    %794 = sbr.rel (0) target = $region29
  $region28: #{mlp_head.1} parent=0 // pred_region
    _
  $region29: #{mlp_head.1} parent=0 // pred_fallthru
    _

</llo_original>
